<compile_context>
chip_gen: v6e
topology: v6e:2x2x1
jax: 0.10.0
libtpu: 0.0.40
codegen_flags: <defaults>
</compile_context>

<pallas_src>
import functools

import jax
import jax.numpy as jnp
from jax.experimental import pallas as pl
from jax.experimental.pallas import tpu as pltpu


def _pick_tile(n, candidates):
    """Largest candidate tile that divides n; fall back to n (single tile)."""
    for t in candidates:
        if t <= n and n % t == 0:
            return t
    return n


def _vmem_capacity_bytes():
    """Per-core VMEM capacity; conservative v7x default if the query fails."""
    try:
        cap = getattr(pltpu.get_tpu_info(), "vmem_capacity_bytes", None)
        if cap:
            return int(cap)
    except Exception:
        pass
    return 64 * 2 ** 20


# --------------------------------------------------------------------------
# Kernel 1: dense row-wise L2 normalization (used for the gathered centers).
# --------------------------------------------------------------------------
def _normalize_rows_kernel(x_ref, o_ref, *, eps):
    x = x_ref[...].astype(jnp.float32)
    ss = jnp.sum(x * x, axis=-1, keepdims=True)
    # x * rsqrt(max(ss, eps^2)) == x / max(||x||_2, eps)  (F.normalize); rsqrt -> EUP
    o_ref[...] = (x * jax.lax.rsqrt(jnp.maximum(ss, eps * eps))).astype(o_ref.dtype)


def _normalize_rows(x, out_dtype, eps):
    n, d = x.shape
    # Prefer R a multiple of 16 (bf16 sublane packing => dense writebacks).
    r = _pick_tile(n, (512, 256, 128, 64, 32, 16))
    return pl.pallas_call(
        functools.partial(_normalize_rows_kernel, eps=float(eps)),
        grid=(n // r,),
        in_specs=[pl.BlockSpec((r, d), lambda i: (i, 0))],
        out_specs=pl.BlockSpec((r, d), lambda i: (i, 0)),
        out_shape=jax.ShapeDtypeStruct((n, d), out_dtype),
        compiler_params=pltpu.CompilerParams(dimension_semantics=("parallel",)),
    )(x)


# --------------------------------------------------------------------------
# Kernel 2: batch x column tiled cross entropy over the (B, B) cosine logits.
# --------------------------------------------------------------------------
def _lmcl_loss_kernel(feat_ref, cb_ref, cb2_ref, loss_ref, q_sc, m_sc, l_sc,
                      *, s, eps):
    """
    feat_ref: (TB, D) f32   features row tile (block index constant over columns)
    cb_ref:   (TN, D) mxu   normalized centers[targets], column tile
    cb2_ref:  (TB, D) mxu   normalized centers[targets[targets]], row tile
    loss_ref: (TB, 1) f32   per-row loss, written at the last column step
    q_sc:     (TB, D) mxu   scratch: normalized, s-scaled features
    m_sc/l_sc:(TB, 1) f32   scratch: online-softmax running max / sum-exp
    """
    k = pl.program_id(1)

    @pl.when(k == 0)
    def _init():
        feats = feat_ref[...].astype(jnp.float32)
        ss = jnp.sum(feats * feats, axis=1, keepdims=True)
        feats = feats * jax.lax.rsqrt(jnp.maximum(ss, eps * eps))
        # Fold the CosFace scale `s` into the (TB, D) operand (cheaper than a
        # full (TB, TN) pass on the logits), then cast once for the MXU.
        q_sc[...] = (feats * s).astype(q_sc.dtype)
        m_sc[...] = jnp.full(m_sc.shape, -jnp.inf, m_sc.dtype)
        l_sc[...] = jnp.zeros(l_sc.shape, l_sc.dtype)

    # logits[r, j] = s * <f_r, cb_j>: contract dim 1 of both operands so no
    # transposed copy of cb is ever materialized.
    z = jax.lax.dot_general(q_sc[...], cb_ref[...], (((1,), (1,)), ((), ())),
                            preferred_element_type=jnp.float32)        # (TB, TN)
    # NOTE: the module's `- m` shifts all logits equally -> cancels in CE; skipped.
    m_new = jnp.maximum(m_sc[...], jnp.max(z, axis=1, keepdims=True))
    alpha = jnp.exp(m_sc[...] - m_new)
    p = jnp.exp(z - m_new)
    l_sc[...] = alpha * l_sc[...] + jnp.sum(p, axis=1, keepdims=True)
    m_sc[...] = m_new

    @pl.when(k == pl.num_programs(1) - 1)
    def _finalize():
        lse = m_sc[...] + jnp.log(l_sc[...])                            # (TB, 1)
        # Target logit via a (TB, D) row-wise dot (replaces the old (TB, B)
        # iota/where/masked-sum pass; B/D times less VPU/XLU work).
        tgt_logit = jnp.sum(q_sc[...].astype(jnp.float32) *
                            cb2_ref[...].astype(jnp.float32),
                            axis=1, keepdims=True)                      # (TB, 1)
        loss_ref[...] = lse - tgt_logit


def lmcl_loss(features, centers, targets, s=30.0, m=0.4, *,
              mxu_dtype=jnp.bfloat16, eps=1e-12, tb=None, tn=None):
    """Pallas-backed LMCL (CosFace) loss.

    features: (B, D) f32, centers: (C, D) f32, targets: (B,) int (< B and < C).
    `mxu_dtype` picks the matmul operand dtype (bf16 is MXU-native on
    v5e/v6e/v7x; float32 for bit-faithful checks).  `m` is accepted for API
    parity but cancels inside the cross entropy, so it never affects the
    result.  `tb` / `tn` optionally override the batch-row / logit-column
    tile sizes (must divide B).
    """
    del m
    B, D = features.shape
    C, Dc = centers.shape
    assert D == Dc
    tgt = targets.astype(jnp.int32)

    # ---- 0) row gathers in XLA (B*D traffic, no per-row kernel grid steps) --
    cb_raw = jnp.take(centers, tgt, axis=0)                 # centers[targets], (B, D)
    # ---- 1) L2-normalize the gathered rows in dense (R, D) Pallas tiles -----
    cb = _normalize_rows(cb_raw, mxu_dtype, eps)            # (B, D), mxu dtype
    # Column j of the (B, B) logit matrix holds center targets[j], so the CE
    # "target logit" of row i is s * <f_i, cb[targets[i]]>.
    cb2 = jnp.take(cb, tgt, axis=0)                         # (B, D), mxu dtype

    # ---- 2) batch x column tiled cross-entropy over the (B, B) logits -------
    # tb = 256 fills the 256x256 MXU M dim (v6e/v7x) with far less vreg/VMEM
    # pressure than 512; column tiling bounds VMEM independent of B.
    if tb is None:
        tb = _pick_tile(B, (256, 128, 64, 32, 16, 8))
    if tn is None:
        tn = _pick_tile(B, (512, 256, 128, 64, 32, 16, 8))
    assert B % tb == 0 and B % tn == 0, "tb/tn must divide the batch size"

    itemsize = jnp.dtype(mxu_dtype).itemsize
    vmem_est = (2 * tb * D * 4             # features tiles (double-buffered, f32)
                + 2 * tn * D * itemsize    # cb column tiles (double-buffered)
                + 2 * tb * D * itemsize    # cb2 row tiles (double-buffered)
                + tb * D * itemsize        # q scratch
                + 6 * tb * 4               # m/l scratch + loss output buffers
                + 4 * tb * tn * 4)         # z / p temporaries + spill headroom
    cap = _vmem_capacity_bytes()           # 64 MiB/TC on v7x, 128 MiB on v5e/v6e
    vmem_limit = int(min(3 * cap // 4, max(32 * 2 ** 20, 4 * vmem_est)))
    vmem_limit = max(vmem_limit, 2 * vmem_est)

    cost = pl.CostEstimate(
        flops=2 * B * B * D + 8 * B * B,
        transcendentals=B * B + 2 * B,
        bytes_accessed=(B * D * 4                         # features
                        + (B // tb) * B * D * itemsize    # cb re-read per row tile
                        + B * D * itemsize                # cb2
                        + B * 4),                         # per-row losses
    )

    per_row = pl.pallas_call(
        functools.partial(_lmcl_loss_kernel, s=float(s), eps=float(eps)),
        grid=(B // tb, B // tn),
        in_specs=[
            pl.BlockSpec((tb, D), lambda i, k: (i, 0)),   # features row tile
            pl.BlockSpec((tn, D), lambda i, k: (k, 0)),   # cb column tile
            pl.BlockSpec((tb, D), lambda i, k: (i, 0)),   # cb2 row tile
        ],
        out_specs=pl.BlockSpec((tb, 1), lambda i, k: (i, 0)),
        out_shape=jax.ShapeDtypeStruct((B, 1), jnp.float32),
        scratch_shapes=[
            pltpu.VMEM((tb, D), mxu_dtype),     # q: normalized, s-scaled features
            pltpu.VMEM((tb, 1), jnp.float32),   # running max
            pltpu.VMEM((tb, 1), jnp.float32),   # running sum-exp
        ],
        compiler_params=pltpu.CompilerParams(
            # Rows split across TensorCores (v7x megacore); columns are the
            # sequential online-softmax reduction axis.
            dimension_semantics=("parallel", "arbitrary"),
            vmem_limit_bytes=vmem_limit,
        ),
        cost_estimate=cost,
    )(features, cb, cb2)
    return jnp.mean(per_row[:, 0])


def lmcl_loss_reference(features, centers, targets, s=30.0, m=0.4, eps=1e-12):
    """Pure-JAX reference mirroring the PyTorch forward (full f32 precision)."""
    f = features / jnp.maximum(
        jnp.linalg.norm(features, axis=1, keepdims=True), eps)
    c = centers / jnp.maximum(
        jnp.linalg.norm(centers, axis=1, keepdims=True), eps)
    cb = c[targets]                                               # (B, D)
    logits = s * jnp.matmul(f, cb.T, precision=jax.lax.Precision.HIGHEST)
    z = logits - m
    logp = z - jax.scipy.special.logsumexp(z, axis=1, keepdims=True)
    return -jnp.mean(logp[jnp.arange(features.shape[0]), targets])


if __name__ == "__main__":
    key = jax.random.PRNGKey(0)
    B, D, C = 32, 64, 48            # batch, feat_dim, num_classes (small)
    k1, k2, k3 = jax.random.split(key, 3)

    features = jax.random.normal(k1, (B, D), dtype=jnp.float32)
    # nn.init.xavier_normal_(gain=1): std = sqrt(2 / (fan_in + fan_out))
    centers = jax.random.normal(k2, (C, D), dtype=jnp.float32) * jnp.sqrt(
        2.0 / (C + D))
    # The torch module's (B, B)-logit cross entropy requires targets < B.
    targets = jax.random.randint(k3, (B,), 0, min(B, C), dtype=jnp.int32)

    ref = lmcl_loss_reference(features, centers, targets)

    # f32 MXU-operand path, default tiles (single column step): tight check.
    loss_f32 = jax.block_until_ready(
        lmcl_loss(features, centers, targets, mxu_dtype=jnp.float32))
    assert jnp.allclose(loss_f32, ref, atol=5e-4, rtol=5e-4), (loss_f32, ref)

    # Forced small tiles (4 row tiles x 4 column steps) to exercise the
    # online-softmax column loop and the parallel row axis.
    loss_tiled = jax.block_until_ready(
        lmcl_loss(features, centers, targets, mxu_dtype=jnp.float32, tb=8, tn=8))
    assert jnp.allclose(loss_tiled, ref, atol=5e-4, rtol=5e-4), (loss_tiled, ref)

    # bf16 MXU-operand path (perf default on v5e/v6e/v7x): loose check.
    loss_bf16 = jax.block_until_ready(lmcl_loss(features, centers, targets))
    assert bool(jnp.isfinite(loss_bf16))
    assert jnp.allclose(loss_bf16, ref, atol=2.5e-1, rtol=1e-1), (loss_bf16, ref)

    print("KERNEL_OK")
</pallas_src>

<mosaic_0001>
module attributes {stable_mosaic.version = 11 : i64} {
  func.func @_normalize_rows_kernel(%arg0: i32, %arg1: memref<32x64xf32, #tpu.memory_space<vmem>>, %arg2: memref<32x64xf32, #tpu.memory_space<vmem>>) attributes {dimension_semantics = [#tpu.dimension_semantics<parallel>], iteration_bounds = array<i64: 1>, scalar_prefetch = 0 : i64, scratch_operands = 0 : i64, tpu.core_type = #tpu.core_type<tc>, window_params = [{transform_indices = @transform_0, window_bounds = array<i64: 32, 64>}, {transform_indices = @transform_1, window_bounds = array<i64: 32, 64>}]} {
    %c0 = arith.constant 0 : index
    %c0_0 = arith.constant 0 : index
    %0 = vector.load %arg1[%c0, %c0_0] : memref<32x64xf32, #tpu.memory_space<vmem>>, vector<32x64xf32>
    %1 = arith.mulf %0, %0 : vector<32x64xf32>
    %cst = arith.constant dense<0.000000e+00> : vector<32xf32>
    %2 = vector.multi_reduction <add>, %1, %cst [1] : vector<32x64xf32> to vector<32xf32>
    %3 = vector.shape_cast %2 : vector<32xf32> to vector<32x1xf32>
    %cst_1 = arith.constant 1.000000e-24 : f32
    %4 = vector.broadcast %cst_1 : f32 to vector<32x1xf32>
    %5 = arith.maximumf %3, %4 : vector<32x1xf32>
    %6 = math.rsqrt %5 : vector<32x1xf32>
    %7 = vector.broadcast %6 : vector<32x1xf32> to vector<32x64xf32>
    %8 = arith.mulf %0, %7 : vector<32x64xf32>
    %c0_2 = arith.constant 0 : index
    %c0_3 = arith.constant 0 : index
    %9 = vector.load %arg2[%c0_2, %c0_3] : memref<32x64xf32, #tpu.memory_space<vmem>>, vector<32x64xf32>
    tpu.vector_store %arg2[%c0_2, %c0_3], %8 {strides = array<i32>} : memref<32x64xf32, #tpu.memory_space<vmem>>, vector<32x64xf32>,
    return
  }
  func.func @transform_0(%arg0: i32) -> (i32, i32) {
    %c0_i32 = arith.constant 0 : i32
    %c0_i32_0 = arith.constant 0 : i32
    return %arg0, %c0_i32 : i32, i32
  }
  func.func @transform_1(%arg0: i32) -> (i32, i32) {
    %c0_i32 = arith.constant 0 : i32
    %c0_i32_0 = arith.constant 0 : i32
    return %arg0, %c0_i32 : i32, i32
  }
}

</mosaic_0001>

<llo_original>
// kernel: tpu_custom_call.1
$region0: #{tpu_custom_call.1}
  #allocation0 [shape = 'u32[]', space=smem, size = 0x4, offset = 0x4, fixed_abs, tag = 'smem constant byte address 0x4 - core index']
  #allocation1 [shape = 'u32[144,128]{1,0:T(1,128)}', space=vmem, size = 0x12000, scoped, tag = 'internal scratch']
  %s0 = inlined_call_operand.hbm [shape: f32[32,64], index: 0, kind: input, shape index: {}]
  %s1 = inlined_call_operand.hbm [shape: f32[32,64], index: 1, kind: output, shape index: {}]
  %s2 = sld [smem:[#allocation0]]
  $region18: #{tpu_custom_call.1} parent=0
    _
  %s4 = ssub.s32 1, %s2
  %s5 = scalar_select 0, %s4, %s2
  $region1: #{tpu_custom_call.1} parent=0
    #allocation2 [shape = 'u8[16384]{0}', space=vmem, size = 0x4000, scoped, tag = 'input window, operand 0, single buffered']
    #allocation3 [shape = 's32[1]{0}', space=sflag, size = 0x4, scoped, tag = 'scoped memory for tpu_custom_call.1']
    #allocation4 [shape = 's32[1]{0}', space=sflag, size = 0x4, scoped, tag = 'scoped memory for tpu_custom_call.1']
    #allocation5 [shape = 'u8[16384]{0}', space=vmem, size = 0x4000, scoped, tag = 'output window, operand 0, single buffered']
    %6 = vsyncpa [#allocation3], 0
    %7 = vsyncpa [#allocation4], 0
    // Predicated region
    $region2: #{tpu_custom_call.1} parent=1 // pred_check
      _
    $region3: #{tpu_custom_call.1} parent=1 // pred_check_branch
      %9 = sbr.rel (0) target = $region5
    $region4: #{tpu_custom_call.1} parent=1 // pred_region
      %s11 = ssub.s32 512, 512
      %12 = vsyncadd [#allocation3], %s11
      %s13 = sshll.u32 [#allocation2], 4
      %s14 = int_to_ptr.vmem [resolvable:$true] %s13
      %19 = dma.hbm_to_vmem [thread:$0]  %s0, 512, %s14, [#allocation3], 128, 128, 8
    $region5: #{tpu_custom_call.1} parent=1 // pred_fallthru
      _
    // Predicated region
    $region6: #{tpu_custom_call.1} parent=1 // pred_check
      _
    $region7: #{tpu_custom_call.1} parent=1 // pred_check_branch
      %21 = sbr.rel (0) target = $region9
    $region8: #{tpu_custom_call.1} parent=1 // pred_region
      %22 = dma.done [#allocation3], 512
    $region9: #{tpu_custom_call.1} parent=1 // pred_fallthru
      _
    %v23 = vld [vmem:[#allocation2] sm:$0xff]
    %v24 = vld [vmem:[#allocation2 + $0x8] sm:$0xff]
    %v25 = vld [vmem:[#allocation2 + $0x10] sm:$0xff]
    %v26 = vld [vmem:[#allocation2 + $0x18] sm:$0xff]
    %v27 = vmul.f32 %v23, %v23
    %v28 = vmul.f32 %v24, %v24
    %v29 = vmul.f32 %v25, %v25
    %v30 = vmul.f32 %v26, %v26
    %vm31 = vcmask 523264
    %v32 = vsel %vm31, %v27, 0.0
    %33 = vadd.xlane.f32.xlu0 %v32
    %v34 = vpop.xlane.xlu0 %33
    %v35 = vsel %vm31, %v28, 0.0
    %36 = vadd.xlane.f32.xlu0 %v35
    %v37 = vpop.xlane.xlu0 %36
    %v38 = vsel %vm31, %v29, 0.0
    %39 = vadd.xlane.f32.xlu0 %v38
    %v40 = vpop.xlane.xlu0 %39
    %v41 = vsel %vm31, %v30, 0.0
    %42 = vadd.xlane.f32.xlu0 %v41
    %v43 = vpop.xlane.xlu0 %42
    %v44 = vmax.f32 %v34, 1e-24
    %v45 = vmax.f32 %v37, 1e-24
    %v46 = vmax.f32 %v40, 1e-24
    %v47 = vmax.f32 %v43, 1e-24
    %v48 = vrsqrt.pop %v44
    %v49 = vrsqrt.pop %v45
    %v50 = vrsqrt.pop %v46
    %v51 = vrsqrt.pop %v47
    %v52 = vmul.f32 %v23, %v48
    %v53 = vmul.f32 %v24, %v49
    %v54 = vmul.f32 %v25, %v50
    %v55 = vmul.f32 %v26, %v51
    %56 = vst.msk [vmem:[#allocation5] sm:$0xff] %vm31, %v52
    %57 = vst.msk [vmem:[#allocation5 + $0x8] sm:$0xff] %vm31, %v53
    %58 = vst.msk [vmem:[#allocation5 + $0x10] sm:$0xff] %vm31, %v54
    %59 = vst.msk [vmem:[#allocation5 + $0x18] sm:$0xff] %vm31, %v55
    // Predicated region
    $region10: #{tpu_custom_call.1} parent=1 // pred_check
      _
    $region11: #{tpu_custom_call.1} parent=1 // pred_check_branch
      %61 = sbr.rel (0) target = $region13
    $region12: #{tpu_custom_call.1} parent=1 // pred_region
      %s63 = ssub.s32 512, 512
      %64 = vsyncadd [#allocation4], %s63
      %s65 = sshll.u32 [#allocation5], 4
      %s66 = int_to_ptr.vmem [resolvable:$true] %s65
      %71 = dma.vmem_to_hbm [thread:$0]  %s66, 512, %s1, [#allocation4], 128, 128, 8
    $region13: #{tpu_custom_call.1} parent=1 // pred_fallthru
      _
    // Predicated region
    $region14: #{tpu_custom_call.1} parent=1 // pred_check
      _
    $region15: #{tpu_custom_call.1} parent=1 // pred_check_branch
      %73 = sbr.rel (0) target = $region17
    $region16: #{tpu_custom_call.1} parent=1 // pred_region
      %74 = dma.done [#allocation4], 512
    $region17: #{tpu_custom_call.1} parent=1 // pred_fallthru
      _
    %75 = vsyncpa [#allocation3], 1
    %76 = vsyncpa [#allocation4], 1

</llo_original>
